<compile_context>
chip_gen: v7x
topology: tpu7x:2x2x1
jax: 0.10.0
libtpu: 0.0.40
codegen_flags: <defaults>
</compile_context>

<pallas_src>
import functools

import jax
import jax.numpy as jnp
from jax.experimental import pallas as pl
from jax.experimental.pallas import tpu as pltpu


def _round_up(x, m):
    return ((x + m - 1) // m) * m


# ----------------------------------------------------------------------------
# Pallas kernel: conditional-Gaussian log-prob of one batch tile of z
#   mean    = MLP_mean(cond)                      (Linear -> ReLU -> Linear)
#   log_var = clip(MLP_logvar(cond), -3, 5)
#   m       = (z - mean) * exp(-0.5 * log_var)
#   logp    = -0.5*sum(m^2 + log_var, -1) - 0.5*D*log(2*pi)
# ----------------------------------------------------------------------------
def _cond_gauss_logp_kernel(z_ref, cond_ref, w1_ref, b1_ref,
                            w2m_ref, b2m_ref, w2v_ref, b2v_ref,
                            logp_ref, *, block_rows, total_rows):
    cond = cond_ref[...].astype(jnp.float32)          # (TB, n_conds)
    hidden = w1_ref.shape[1] // 2

    # Fused first layer of both MLPs: one MXU push instead of two.
    h = jnp.dot(cond, w1_ref[...], preferred_element_type=jnp.float32) + b1_ref[...]
    h = jnp.maximum(h, 0.0)
    hm = h[:, :hidden]
    hv = h[:, hidden:]

    mean = jnp.dot(hm, w2m_ref[...], preferred_element_type=jnp.float32) + b2m_ref[...]
    log_var = jnp.dot(hv, w2v_ref[...], preferred_element_type=jnp.float32) + b2v_ref[...]
    log_var = jnp.clip(log_var, -3.0, 5.0)             # _diff_clamp forward == clamp

    d = mean.shape[1]
    # Upcast folded into the subtraction: no separate full-tile f32 copy of z.
    m = (z_ref[...].astype(jnp.float32) - mean) * jnp.exp(-0.5 * log_var)

    # Single fused length-D reduction: sum(m^2) and sum(log_var) in one pass
    # (halves the XLU reduce work and drops one full-tile VPU accumulation).
    red = jnp.sum(m * m + log_var, axis=1)              # (TB,)
    logp = -0.5 * red - 0.5 * d * jnp.log(2.0 * jnp.pi)  # (TB,)
    logp = logp[None, :]                                 # lane-dense (1, TB) row

    if total_rows % block_rows != 0:
        # Padded tail rows of the last tile: keep their (discarded) outputs
        # deterministic and NaN-free.  Masked after the per-row reduction, so
        # garbage rows cannot contaminate valid rows.
        rows = (pl.program_id(0) * block_rows
                + jax.lax.broadcasted_iota(jnp.int32, (1, block_rows), 1))
        logp = jnp.where(rows < total_rows, logp, 0.0)

    logp_ref[...] = logp.astype(logp_ref.dtype)


# ----------------------------------------------------------------------------
# Tiling / VMEM planner
# ----------------------------------------------------------------------------
def _plan_tiling(B, D, n_conds, hidden, z_itemsize, cond_itemsize,
                 max_rows_per_tile=None):
    """Pick the batch tile and an honest scoped-VMEM limit.

    Counts everything actually resident in VMEM: the single-buffered weights
    (w2_mean/w2_lv dominate at 2*hidden*D*4 bytes), the double-buffered
    z / cond / output blocks with their (8,128) padding, and ~4 full-tile f32
    intermediates (plus the f32 upcast of z when the input is narrower)."""
    try:
        vmem_phys = int(pltpu.get_tpu_info().vmem_capacity_bytes)
    except Exception:
        vmem_phys = 64 * 1024 * 1024     # v7x per-TC floor; v5e/v6e have 128 MiB

    def padded(r, c, itemsize=4):
        return _round_up(max(r, 1), 8) * _round_up(max(c, 1), 128) * itemsize

    # Resident (single-buffered) weights / biases.
    resident = (padded(n_conds, 2 * hidden) + padded(1, 2 * hidden)
                + 2 * padded(hidden, D) + 2 * padded(1, D))

    # Bytes per batch row that scale with the tile.
    z_row = 2 * D * z_itemsize                              # z block, x2 buffers
    cond_row = 2 * _round_up(n_conds, 128) * cond_itemsize  # cond block, lane-padded
    out_row = 2 * 8 * 4                                     # (1,tb) block pads to 8 sublanes
    inter_row = (4 + (0 if z_itemsize >= 4 else 1)) * D * 4
    per_row = z_row + cond_row + out_row + inter_row

    budget = int(vmem_phys * 0.72) - resident - (2 << 20)   # compiler-scratch slack
    tb = max(budget // per_row, 8)
    tb = min(tb, 4096)
    if max_rows_per_tile is not None:
        tb = min(tb, max_rows_per_tile)

    if B <= tb:
        if B >= 256:
            # Never hand v7x a single-step grid: split so both TensorCores
            # (and their DMA engines) pull half of the z stream each.
            tb = _round_up(pl.cdiv(B, 2), 128)
        else:
            tb = B                       # single full-extent batch block
    else:
        # Multi-step grid: tb must be a multiple of 128 so the lane-dense
        # (1, tb) output blocks stay unmasked; capping at ceil(B/2) keeps the
        # grid >= 2 steps for v7x megacore sharding.
        # TODO(synk): extremely large D (resident weights ~ VMEM) would need a
        # D-tiled variant; 128 rows is the floor here.
        tb = max((tb // 128) * 128, 128)
        tb = min(tb, _round_up(pl.cdiv(B, 2), 128))

    num_tiles = pl.cdiv(B, tb)
    need = resident + tb * per_row + (4 << 20)
    vmem_limit = int(min(max(need, 32 << 20), int(vmem_phys * 0.9)))
    return tb, num_tiles, vmem_limit


# ----------------------------------------------------------------------------
# Wrapper around pallas_call
# ----------------------------------------------------------------------------
def cond_gauss_logp(x_flat, cond, params, D, *, max_rows_per_tile=None):
    """x_flat: (B, 2*D) flattened NCHW x (z is the second half along dim 1);
    cond: (B, n_conds); params: output of prepare_params().
    Returns (B,) float32 log-prob of z under the conditional Gaussian prior."""
    B, twoD = x_flat.shape
    n_conds = cond.shape[1]
    w1, b1 = params["w1"], params["b1"]
    hidden = w1.shape[1] // 2

    tb, num_tiles, vmem_limit = _plan_tiling(
        B, D, n_conds, hidden,
        jnp.dtype(x_flat.dtype).itemsize, jnp.dtype(cond.dtype).itemsize,
        max_rows_per_tile=max_rows_per_tile)

    if twoD == 2 * D and D % 128 == 0:
        # Fold the channel split into the BlockSpec: block index 1 along the
        # last axis selects the second half of x_flat -- no z slice copy.
        z_arr = x_flat
        z_spec = pl.BlockSpec((tb, D), lambda i: (i, 1))
    else:
        # Fallback when D is not lane-aligned inside x_flat.
        z_arr = x_flat[:, D:]
        z_spec = pl.BlockSpec((tb, D), lambda i: (i, 0))

    def resident(arr):
        # Weights/biases: fetched once, resident across the whole grid.
        # Buffered(1) drops the pointless second pipeline buffer so large
        # (hidden, D) weights occupy VMEM only once.
        try:
            return pl.BlockSpec(arr.shape, lambda i: (0, 0),
                                pipeline_mode=pl.Buffered(1))
        except TypeError:   # older API without pipeline_mode
            return pl.BlockSpec(arr.shape, lambda i: (0, 0))

    kernel = functools.partial(_cond_gauss_logp_kernel,
                               block_rows=tb, total_rows=B)

    out = pl.pallas_call(
        kernel,
        out_shape=jax.ShapeDtypeStruct((1, num_tiles * tb), jnp.float32),
        grid_spec=pltpu.PrefetchScalarGridSpec(
            num_scalar_prefetch=0,
            grid=(num_tiles,),
            in_specs=[
                z_spec,
                pl.BlockSpec((tb, n_conds), lambda i: (i, 0)),
                resident(w1), resident(b1),
                resident(params["w2_mean"]), resident(params["b2_mean"]),
                resident(params["w2_lv"]), resident(params["b2_lv"]),
            ],
            # Lane-dense output: one (1, tb) row per grid step instead of a
            # (tb, 1) masked-store column -> one contiguous writeback burst.
            out_specs=pl.BlockSpec((1, tb), lambda i: (0, i)),
        ),
        compiler_params=pltpu.CompilerParams(
            dimension_semantics=("parallel",),   # megacore sharding on v7x
            vmem_limit_bytes=vmem_limit,
        ),
    )(z_arr, cond, w1, b1,
      params["w2_mean"], params["b2_mean"],
      params["w2_lv"], params["b2_lv"])
    return out[0, :B]


# ----------------------------------------------------------------------------
# One-time parameter prep (hoisted out of the per-forward traced path)
# ----------------------------------------------------------------------------
def prepare_params(params):
    """Fuses the two first-layer weights/biases into a single (n_conds, 2*hidden)
    GEMM operand.  Weights stay f32: bf16 MXU operands were considered but kept
    f32 to preserve the f32 reference tolerance (kernel is HBM-bound anyway)."""
    return {
        "w1": jnp.concatenate([params["w1_mean"], params["w1_lv"]], axis=1),
        "b1": jnp.concatenate([params["b1_mean"], params["b1_lv"]], axis=1),
        "w2_mean": params["w2_mean"], "b2_mean": params["b2_mean"],
        "w2_lv": params["w2_lv"], "b2_lv": params["b2_lv"],
    }


# ----------------------------------------------------------------------------
# SplitCondPrior.forward
# ----------------------------------------------------------------------------
def split_cond_prior_forward(x, cond, prepared_params, *, max_rows_per_tile=None):
    """x: (B, C, H, W) NCHW, cond: (B, n_conds), prepared_params: prepare_params(...).
    Returns (x_keep, z, likelihood + logdet) exactly like the PyTorch module."""
    B, C, H, W = x.shape
    D = (C // 2) * H * W

    # flow.forward -> identity flow, logdet = 0   (injected FlowModule)
    logdet = jnp.zeros((B,), jnp.float32)

    # Split.forward -> chunk channels in half (returned to the caller).
    x_keep = x[:, : C // 2]
    z = x[:, C // 2:]

    # prior.likelihood(z, cond): feed a free (B, C*H*W) view of x; the kernel's
    # z BlockSpec selects the second half -> no slice copy / upcast on the hot path.
    logp = cond_gauss_logp(x.reshape(B, C * H * W), cond, prepared_params, D,
                           max_rows_per_tile=max_rows_per_tile)

    return x_keep, z, logp + logdet


# ----------------------------------------------------------------------------
# Deterministic parameter init (MLP: Linear(n_conds,hidden) -> ReLU -> Linear(hidden,D))
# ----------------------------------------------------------------------------
def init_params(key, n_conds, hidden, out_dim):
    ks = jax.random.split(key, 8)
    s1 = 1.0 / jnp.sqrt(n_conds)
    s2 = 1.0 / jnp.sqrt(hidden)
    return {
        "w1_mean": jax.random.uniform(ks[0], (n_conds, hidden), jnp.float32, -s1, s1),
        "b1_mean": jax.random.uniform(ks[1], (1, hidden), jnp.float32, -s1, s1),
        "w2_mean": jax.random.uniform(ks[2], (hidden, out_dim), jnp.float32, -s2, s2),
        "b2_mean": jax.random.uniform(ks[3], (1, out_dim), jnp.float32, -s2, s2),
        "w1_lv":   jax.random.uniform(ks[4], (n_conds, hidden), jnp.float32, -s1, s1),
        "b1_lv":   jax.random.uniform(ks[5], (1, hidden), jnp.float32, -s1, s1),
        "w2_lv":   jax.random.uniform(ks[6], (hidden, out_dim), jnp.float32, -s2, s2),
        "b2_lv":   jax.random.uniform(ks[7], (1, out_dim), jnp.float32, -s2, s2),
    }


# Pure-JAX reference for verification
def _reference(x, cond, params):
    B, C, H, W = x.shape
    x_keep = x[:, : C // 2]
    z = x[:, C // 2:]
    zf = z.reshape(B, -1).astype(jnp.float32)
    c = cond.astype(jnp.float32)
    hm = jnp.maximum(c @ params["w1_mean"] + params["b1_mean"], 0.0)
    mean = hm @ params["w2_mean"] + params["b2_mean"]
    hv = jnp.maximum(c @ params["w1_lv"] + params["b1_lv"], 0.0)
    lv = jnp.clip(hv @ params["w2_lv"] + params["b2_lv"], -3.0, 5.0)
    m = (zf - mean) * jnp.exp(-0.5 * lv)
    d = zf.shape[1]
    logp = (-0.5 * jnp.sum(m * m, axis=1)
            - 0.5 * d * jnp.log(2.0 * jnp.pi)
            - 0.5 * jnp.sum(lv, axis=1))
    return x_keep, z, logp


if __name__ == "__main__":
    B, C, H, W = 2, 4, 16, 16          # x: (B, C, H, W) NCHW
    n_conds, hidden = 8, 32
    out_size = C * H * W               # module's out_size; prior uses out_size // 2
    D = out_size // 2                  # = (C//2) * H * W

    key = jax.random.PRNGKey(0)
    kx, kc, kp = jax.random.split(key, 3)
    x = jax.random.normal(kx, (B, C, H, W), jnp.float32)
    cond = jax.random.normal(kc, (B, n_conds), jnp.float32)
    params = init_params(kp, n_conds, hidden, D)
    prepped = prepare_params(params)   # one-time prep, reused across forwards

    x_keep, z, ll = split_cond_prior_forward(x, cond, prepped)
    jax.block_until_ready(ll)

    xr, zr, llr = _reference(x, cond, params)
    assert x_keep.shape == (B, C // 2, H, W) and z.shape == (B, C // 2, H, W)
    assert ll.shape == (B,)
    assert jnp.allclose(x_keep, xr) and jnp.allclose(z, zr)
    assert jnp.allclose(ll, llr, rtol=1e-4, atol=1e-3), (ll, llr)

    # Exercise the multi-tile grid, the lane-dense output with grid > 1 and the
    # tail-row mask (B2 is not a multiple of the forced 128-row tile).
    B2 = 300
    k2x, k2c = jax.random.split(jax.random.PRNGKey(1))
    x2 = jax.random.normal(k2x, (B2, C, H, W), jnp.float32)
    cond2 = jax.random.normal(k2c, (B2, n_conds), jnp.float32)
    _, _, ll2 = split_cond_prior_forward(x2, cond2, prepped, max_rows_per_tile=128)
    jax.block_until_ready(ll2)
    _, _, ll2r = _reference(x2, cond2, params)
    assert ll2.shape == (B2,)
    # Slightly looser: the reference's XLA matmul precision differs from the
    # in-kernel f32 MXU path; |logp| ~ 7e2 so this is still a tight check.
    assert jnp.allclose(ll2, ll2r, rtol=1e-3, atol=1e-2)

    print("KERNEL_OK")
</pallas_src>

<mosaic_0001>
module attributes {stable_mosaic.version = 11 : i64} {
  func.func @_cond_gauss_logp_kernel(%arg0: i32, %arg1: memref<2x512xf32, #tpu.memory_space<vmem>>, %arg2: memref<2x8xf32, #tpu.memory_space<vmem>>, %arg3: memref<8x64xf32, #tpu.memory_space<vmem>>, %arg4: memref<1x64xf32, #tpu.memory_space<vmem>>, %arg5: memref<32x512xf32, #tpu.memory_space<vmem>>, %arg6: memref<1x512xf32, #tpu.memory_space<vmem>>, %arg7: memref<32x512xf32, #tpu.memory_space<vmem>>, %arg8: memref<1x512xf32, #tpu.memory_space<vmem>>, %arg9: memref<1x2xf32, #tpu.memory_space<vmem>>) attributes {dimension_semantics = [#tpu.dimension_semantics<parallel>], iteration_bounds = array<i64: 1>, scalar_prefetch = 0 : i64, scratch_operands = 0 : i64, tpu.core_type = #tpu.core_type<tc>, window_params = [{transform_indices = @transform_0, window_bounds = array<i64: 2, 512>}, {transform_indices = @transform_1, window_bounds = array<i64: 2, 8>}, {pipeline_mode = #tpu.pipeline_mode<synchronous>, transform_indices = @transform_2, window_bounds = array<i64: 8, 64>}, {pipeline_mode = #tpu.pipeline_mode<synchronous>, transform_indices = @transform_3, window_bounds = array<i64: 1, 64>}, {pipeline_mode = #tpu.pipeline_mode<synchronous>, transform_indices = @transform_4, window_bounds = array<i64: 32, 512>}, {pipeline_mode = #tpu.pipeline_mode<synchronous>, transform_indices = @transform_5, window_bounds = array<i64: 1, 512>}, {pipeline_mode = #tpu.pipeline_mode<synchronous>, transform_indices = @transform_6, window_bounds = array<i64: 32, 512>}, {pipeline_mode = #tpu.pipeline_mode<synchronous>, transform_indices = @transform_7, window_bounds = array<i64: 1, 512>}, {transform_indices = @transform_8, window_bounds = array<i64: 1, 2>}]} {
    %c0 = arith.constant 0 : index
    %c0_0 = arith.constant 0 : index
    %0 = vector.load %arg2[%c0, %c0_0] : memref<2x8xf32, #tpu.memory_space<vmem>>, vector<2x8xf32>
    %c0_1 = arith.constant 0 : index
    %c0_2 = arith.constant 0 : index
    %1 = vector.load %arg3[%c0_1, %c0_2] : memref<8x64xf32, #tpu.memory_space<vmem>>, vector<8x64xf32>
    %cst = arith.constant dense<0.000000e+00> : vector<2x64xf32>
    %2 = tpu.matmul %0, %1, %cst {dimension_numbers = #tpu.dot_dimension_numbers<[1], [0], [0], [1], [0, 0, 1, 1], [], []>} : vector<2x8xf32>, vector<8x64xf32>, vector<2x64xf32> -> vector<2x64xf32>
    %c0_3 = arith.constant 0 : index
    %c0_4 = arith.constant 0 : index
    %3 = vector.load %arg4[%c0_3, %c0_4] : memref<1x64xf32, #tpu.memory_space<vmem>>, vector<1x64xf32>
    %4 = vector.broadcast %3 : vector<1x64xf32> to vector<2x64xf32>
    %5 = arith.addf %2, %4 : vector<2x64xf32>
    %cst_5 = arith.constant 0.000000e+00 : f32
    %6 = vector.broadcast %cst_5 : f32 to vector<2x64xf32>
    %7 = arith.maximumf %5, %6 : vector<2x64xf32>
    %8 = vector.extract_strided_slice %7 {offsets = [0, 0], sizes = [2, 32], strides = [1, 1]} : vector<2x64xf32> to vector<2x32xf32>
    %9 = vector.extract_strided_slice %7 {offsets = [0, 32], sizes = [2, 32], strides = [1, 1]} : vector<2x64xf32> to vector<2x32xf32>
    %c0_6 = arith.constant 0 : index
    %c0_7 = arith.constant 0 : index
    %10 = vector.load %arg5[%c0_6, %c0_7] : memref<32x512xf32, #tpu.memory_space<vmem>>, vector<32x512xf32>
    %cst_8 = arith.constant dense<0.000000e+00> : vector<2x512xf32>
    %11 = tpu.matmul %8, %10, %cst_8 {dimension_numbers = #tpu.dot_dimension_numbers<[1], [0], [0], [1], [0, 0, 1, 1], [], []>} : vector<2x32xf32>, vector<32x512xf32>, vector<2x512xf32> -> vector<2x512xf32>
    %c0_9 = arith.constant 0 : index
    %c0_10 = arith.constant 0 : index
    %12 = vector.load %arg6[%c0_9, %c0_10] : memref<1x512xf32, #tpu.memory_space<vmem>>, vector<1x512xf32>
    %13 = vector.broadcast %12 : vector<1x512xf32> to vector<2x512xf32>
    %14 = arith.addf %11, %13 : vector<2x512xf32>
    %c0_11 = arith.constant 0 : index
    %c0_12 = arith.constant 0 : index
    %15 = vector.load %arg7[%c0_11, %c0_12] : memref<32x512xf32, #tpu.memory_space<vmem>>, vector<32x512xf32>
    %cst_13 = arith.constant dense<0.000000e+00> : vector<2x512xf32>
    %16 = tpu.matmul %9, %15, %cst_13 {dimension_numbers = #tpu.dot_dimension_numbers<[1], [0], [0], [1], [0, 0, 1, 1], [], []>} : vector<2x32xf32>, vector<32x512xf32>, vector<2x512xf32> -> vector<2x512xf32>
    %c0_14 = arith.constant 0 : index
    %c0_15 = arith.constant 0 : index
    %17 = vector.load %arg8[%c0_14, %c0_15] : memref<1x512xf32, #tpu.memory_space<vmem>>, vector<1x512xf32>
    %18 = vector.broadcast %17 : vector<1x512xf32> to vector<2x512xf32>
    %19 = arith.addf %16, %18 : vector<2x512xf32>
    %cst_16 = arith.constant -3.000000e+00 : f32
    %cst_17 = arith.constant 5.000000e+00 : f32
    %20 = vector.broadcast %cst_16 : f32 to vector<2x512xf32>
    %21 = arith.maximumf %20, %19 : vector<2x512xf32>
    %22 = vector.broadcast %cst_17 : f32 to vector<2x512xf32>
    %23 = arith.minimumf %22, %21 : vector<2x512xf32>
    %c0_18 = arith.constant 0 : index
    %c0_19 = arith.constant 0 : index
    %24 = vector.load %arg1[%c0_18, %c0_19] : memref<2x512xf32, #tpu.memory_space<vmem>>, vector<2x512xf32>
    %25 = arith.subf %24, %14 : vector<2x512xf32>
    %cst_20 = arith.constant -5.000000e-01 : f32
    %26 = vector.broadcast %cst_20 : f32 to vector<2x512xf32>
    %27 = arith.mulf %26, %23 : vector<2x512xf32>
    %28 = math.exp %27 : vector<2x512xf32>
    %29 = arith.mulf %25, %28 : vector<2x512xf32>
    %30 = arith.mulf %29, %29 : vector<2x512xf32>
    %31 = arith.addf %30, %23 : vector<2x512xf32>
    %cst_21 = arith.constant dense<0.000000e+00> : vector<2xf32>
    %32 = vector.multi_reduction <add>, %31, %cst_21 [1] : vector<2x512xf32> to vector<2xf32>
    %cst_22 = arith.constant -5.000000e-01 : f32
    %33 = vector.broadcast %cst_22 : f32 to vector<2xf32>
    %34 = arith.mulf %33, %32 : vector<2xf32>
    %cst_23 = arith.constant 6.28318548 : f32
    %35 = math.log %cst_23 : f32
    %cst_24 = arith.constant 2.560000e+02 : f32
    %36 = arith.mulf %cst_24, %35 : f32
    %37 = vector.broadcast %36 : f32 to vector<2xf32>
    %38 = arith.subf %34, %37 : vector<2xf32>
    %39 = vector.shape_cast %38 : vector<2xf32> to vector<1x2xf32>
    %c0_25 = arith.constant 0 : index
    %c0_26 = arith.constant 0 : index
    %40 = vector.load %arg9[%c0_25, %c0_26] : memref<1x2xf32, #tpu.memory_space<vmem>>, vector<1x2xf32>
    tpu.vector_store %arg9[%c0_25, %c0_26], %39 {strides = array<i32>} : memref<1x2xf32, #tpu.memory_space<vmem>>, vector<1x2xf32>,
    return
  }
  func.func @transform_0(%arg0: i32) -> (i32, i32) {
    %c1_i32 = arith.constant 1 : i32
    %c0_i32 = arith.constant 0 : i32
    return %arg0, %c1_i32 : i32, i32
  }
  func.func @transform_1(%arg0: i32) -> (i32, i32) {
    %c0_i32 = arith.constant 0 : i32
    %c0_i32_0 = arith.constant 0 : i32
    return %arg0, %c0_i32 : i32, i32
  }
  func.func @transform_2(%arg0: i32) -> (i32, i32) {
    %c0_i32 = arith.constant 0 : i32
    %c0_i32_0 = arith.constant 0 : i32
    %c0_i32_1 = arith.constant 0 : i32
    return %c0_i32, %c0_i32_0 : i32, i32
  }
  func.func @transform_3(%arg0: i32) -> (i32, i32) {
    %c0_i32 = arith.constant 0 : i32
    %c0_i32_0 = arith.constant 0 : i32
    %c0_i32_1 = arith.constant 0 : i32
    return %c0_i32, %c0_i32_0 : i32, i32
  }
  func.func @transform_4(%arg0: i32) -> (i32, i32) {
    %c0_i32 = arith.constant 0 : i32
    %c0_i32_0 = arith.constant 0 : i32
    %c0_i32_1 = arith.constant 0 : i32
    return %c0_i32, %c0_i32_0 : i32, i32
  }
  func.func @transform_5(%arg0: i32) -> (i32, i32) {
    %c0_i32 = arith.constant 0 : i32
    %c0_i32_0 = arith.constant 0 : i32
    %c0_i32_1 = arith.constant 0 : i32
    return %c0_i32, %c0_i32_0 : i32, i32
  }
  func.func @transform_6(%arg0: i32) -> (i32, i32) {
    %c0_i32 = arith.constant 0 : i32
    %c0_i32_0 = arith.constant 0 : i32
    %c0_i32_1 = arith.constant 0 : i32
    return %c0_i32, %c0_i32_0 : i32, i32
  }
  func.func @transform_7(%arg0: i32) -> (i32, i32) {
    %c0_i32 = arith.constant 0 : i32
    %c0_i32_0 = arith.constant 0 : i32
    %c0_i32_1 = arith.constant 0 : i32
    return %c0_i32, %c0_i32_0 : i32, i32
  }
  func.func @transform_8(%arg0: i32) -> (i32, i32) {
    %c0_i32 = arith.constant 0 : i32
    %c0_i32_0 = arith.constant 0 : i32
    return %c0_i32, %arg0 : i32, i32
  }
}

</mosaic_0001>

<llo_original>
// kernel: tpu_custom_call.1
$region0: #{tpu_custom_call.1}
  #allocation0 [shape = 'u32[]', space=smem, size = 0x4, offset = 0x4, fixed_abs, tag = 'smem constant byte address 0x4 - core index']
  #allocation1 [shape = 'u32[144,128]{1,0:T(1,128)}', space=vmem, size = 0x12000, scoped, tag = 'internal scratch']
  %s0 = inlined_call_operand.hbm [shape: f32[2,1024], index: 0, kind: input, shape index: {}]
  %s1 = inlined_call_operand.vmem [shape: f32[2,8], index: 1, kind: input, shape index: {}]
  %s2 = inlined_call_operand.hbm [shape: f32[8,64], index: 2, kind: input, shape index: {}]
  %s3 = inlined_call_operand.vmem [shape: f32[1,64], index: 3, kind: input, shape index: {}]
  %s4 = inlined_call_operand.hbm [shape: f32[32,512], index: 4, kind: input, shape index: {}]
  %s5 = inlined_call_operand.vmem [shape: f32[1,512], index: 5, kind: input, shape index: {}]
  %s6 = inlined_call_operand.hbm [shape: f32[32,512], index: 6, kind: input, shape index: {}]
  %s7 = inlined_call_operand.vmem [shape: f32[1,512], index: 7, kind: input, shape index: {}]
  %s8 = inlined_call_operand.hbm [shape: f32[1,2], index: 8, kind: output, shape index: {}]
  %s9 = sld [smem:[#allocation0]]
  $region58: #{tpu_custom_call.1} parent=0
    _
  %s11 = ssub.s32 1, %s9
  %s12 = scalar_select 0, %s11, %s9
  $region1: #{tpu_custom_call.1} parent=0
    #allocation2 [shape = 'u8[4096]{0}', space=vmem, size = 0x1000, scoped, tag = 'input window, operand 0, single buffered']
    #allocation3 [shape = 's32[1]{0}', space=sflag, size = 0x4, scoped, tag = 'scoped memory for tpu_custom_call.1']
    #allocation4 [shape = 's32[1]{0}', space=sflag, size = 0x4, scoped, tag = 'scoped memory for tpu_custom_call.1']
    #allocation5 [shape = 'u8[4096]{0}', space=vmem, size = 0x1000, scoped, tag = 'input window, operand 2, single buffered']
    #allocation6 [shape = 's32[1]{0}', space=sflag, size = 0x4, scoped, tag = 'scoped memory for tpu_custom_call.1']
    #allocation7 [shape = 'u8[65536]{0}', space=vmem, size = 0x10000, scoped, tag = 'input window, operand 4, single buffered']
    #allocation8 [shape = 'u8[65536]{0}', space=vmem, size = 0x10000, scoped, tag = 'input window, operand 6, single buffered']
    #allocation9 [shape = 's32[1]{0}', space=sflag, size = 0x4, scoped, tag = 'scoped memory for tpu_custom_call.1']
    #allocation10 [shape = 'u8[512]{0}', space=vmem, size = 0x400, scoped, tag = 'output window, operand 0, single buffered']
    %13 = vsyncpa [#allocation3], 0
    %14 = vsyncpa [#allocation6], 0
    %15 = vsyncpa [#allocation9], 0
    %16 = vsyncpa [#allocation4], 0
    // Predicated region
    $region2: #{tpu_custom_call.1} parent=1 // pred_check
      _
    $region3: #{tpu_custom_call.1} parent=1 // pred_check_branch
      %18 = sbr.rel (0) target = $region5
    $region4: #{tpu_custom_call.1} parent=1 // pred_region
      %s20 = ssub.s32 128, 128
      %21 = vsyncadd [#allocation3], %s20
      %s22 = scalar_lea.hbm %s0, 128
      %s24 = sshll.u32 [#allocation2], 4
      %s25 = int_to_ptr.vmem [resolvable:$true] %s24
      %27 = dma.hbm_to_vmem [thread:$0]  %s22, 128, %s25, [#allocation3]
    $region5: #{tpu_custom_call.1} parent=1 // pred_fallthru
      _
    // Predicated region
    $region6: #{tpu_custom_call.1} parent=1 // pred_check
      _
    $region7: #{tpu_custom_call.1} parent=1 // pred_check_branch
      %29 = sbr.rel (0) target = $region9
    $region8: #{tpu_custom_call.1} parent=1 // pred_region
      _
    $region9: #{tpu_custom_call.1} parent=1 // pred_fallthru
      _
    // Predicated region
    $region10: #{tpu_custom_call.1} parent=1 // pred_check
      _
    $region11: #{tpu_custom_call.1} parent=1 // pred_check_branch
      %31 = sbr.rel (0) target = $region13
    $region12: #{tpu_custom_call.1} parent=1 // pred_region
      %s33 = ssub.s32 128, 128
      %34 = vsyncadd [#allocation6], %s33
      %s36 = sshll.u32 [#allocation5], 4
      %s37 = int_to_ptr.vmem [resolvable:$true] %s36
      %39 = dma.hbm_to_vmem [thread:$0]  %s2, 128, %s37, [#allocation6]
    $region13: #{tpu_custom_call.1} parent=1 // pred_fallthru
      _
    // Predicated region
    $region14: #{tpu_custom_call.1} parent=1 // pred_check
      _
    $region15: #{tpu_custom_call.1} parent=1 // pred_check_branch
      %41 = sbr.rel (0) target = $region17
    $region16: #{tpu_custom_call.1} parent=1 // pred_region
      _
    $region17: #{tpu_custom_call.1} parent=1 // pred_fallthru
      _
    // Predicated region
    $region18: #{tpu_custom_call.1} parent=1 // pred_check
      _
    $region19: #{tpu_custom_call.1} parent=1 // pred_check_branch
      %43 = sbr.rel (0) target = $region21
    $region20: #{tpu_custom_call.1} parent=1 // pred_region
      %s45 = ssub.s32 2048, 2048
      %46 = vsyncadd [#allocation6], %s45
      %s47 = sshll.u32 [#allocation7], 4
      %s48 = int_to_ptr.vmem [resolvable:$true] %s47
      %53 = dma.hbm_to_vmem [thread:$0]  %s4, 2048, %s48, [#allocation6], 512, 512, 32
    $region21: #{tpu_custom_call.1} parent=1 // pred_fallthru
      _
    // Predicated region
    $region22: #{tpu_custom_call.1} parent=1 // pred_check
      _
    $region23: #{tpu_custom_call.1} parent=1 // pred_check_branch
      %55 = sbr.rel (0) target = $region25
    $region24: #{tpu_custom_call.1} parent=1 // pred_region
      _
    $region25: #{tpu_custom_call.1} parent=1 // pred_fallthru
      _
    // Predicated region
    $region26: #{tpu_custom_call.1} parent=1 // pred_check
      _
    $region27: #{tpu_custom_call.1} parent=1 // pred_check_branch
      %57 = sbr.rel (0) target = $region29
    $region28: #{tpu_custom_call.1} parent=1 // pred_region
      %s59 = ssub.s32 2048, 2048
      %60 = vsyncadd [#allocation9], %s59
      %s61 = sshll.u32 [#allocation8], 4
      %s62 = int_to_ptr.vmem [resolvable:$true] %s61
      %67 = dma.hbm_to_vmem [thread:$0]  %s6, 2048, %s62, [#allocation9], 512, 512, 32
    $region29: #{tpu_custom_call.1} parent=1 // pred_fallthru
      _
    // Predicated region
    $region30: #{tpu_custom_call.1} parent=1 // pred_check
      _
    $region31: #{tpu_custom_call.1} parent=1 // pred_check_branch
      %69 = sbr.rel (0) target = $region33
    $region32: #{tpu_custom_call.1} parent=1 // pred_region
      _
    $region33: #{tpu_custom_call.1} parent=1 // pred_fallthru
      _
    // Predicated region
    $region34: #{tpu_custom_call.1} parent=1 // pred_check
      _
    $region35: #{tpu_custom_call.1} parent=1 // pred_check_branch
      %71 = sbr.rel (0) target = $region37
    $region36: #{tpu_custom_call.1} parent=1 // pred_region
      %72 = dma.done [#allocation3], 128
    $region37: #{tpu_custom_call.1} parent=1 // pred_fallthru
      _
    // Predicated region
    $region38: #{tpu_custom_call.1} parent=1 // pred_check
      _
    $region39: #{tpu_custom_call.1} parent=1 // pred_check_branch
      %74 = sbr.rel (0) target = $region41
    $region40: #{tpu_custom_call.1} parent=1 // pred_region
      %75 = dma.done [#allocation6], 128
    $region41: #{tpu_custom_call.1} parent=1 // pred_fallthru
      _
    // Predicated region
    $region42: #{tpu_custom_call.1} parent=1 // pred_check
      _
    $region43: #{tpu_custom_call.1} parent=1 // pred_check_branch
      %77 = sbr.rel (0) target = $region45
    $region44: #{tpu_custom_call.1} parent=1 // pred_region
      %78 = dma.done [#allocation6], 2048
    $region45: #{tpu_custom_call.1} parent=1 // pred_fallthru
      _
    // Predicated region
    $region46: #{tpu_custom_call.1} parent=1 // pred_check
      _
    $region47: #{tpu_custom_call.1} parent=1 // pred_check_branch
      %80 = sbr.rel (0) target = $region49
    $region48: #{tpu_custom_call.1} parent=1 // pred_region
      %81 = dma.done [#allocation9], 2048
    $region49: #{tpu_custom_call.1} parent=1 // pred_fallthru
      _
    %v82 = vld [vmem:[%s1] sm:$0x3]
    %v83 = vld [vmem:[#allocation5] sm:$0xff]
    %v84 = vld [vmem:[%s3] sm:$0x1]
    %v86 = vlaneseq
    %v87 = vshrl.u32 %v86, 7
    %v88 = vsub.s32 0, %v87
    %v89 = vrot.slane %v84, %v88
    %vm91 = vcmask 64512
    %v93 = vsel %vm91, %v82, 0
    %95 = vmatprep.subr.mxu0 0.0
    %96 = vmatpush1.msra.mxu0 %v83
    %97 = vmatprep.subr.mxu0 0.0
    %98 = vmatpush1.msra.mxu0 0.0
    %99 = vmatprep.subr.mxu0 0.0
    %100 = vmatpush1.msra.mxu0 0.0
    %101 = vmatprep.subr.mxu0 0.0
    %102 = vmatpush1.msra.mxu0 0.0
    %103 = vmatprep.subr.mxu0 0.0
    %104 = vmatpush1.msra.mxu0 0.0
    %105 = vmatprep.subr.mxu0 0.0
    %106 = vmatpush1.msra.mxu0 0.0
    %107 = vmatprep.subr.mxu0 0.0
    %108 = vmatpush1.msra.mxu0 0.0
    %109 = vmatprep.subr.mxu0 0.0
    %110 = vmatpush1.msra.mxu0 0.0
    %111 = vmatprep.subr.mxu0 0.0
    %112 = vmatpush1.msra.mxu0 0.0
    %113 = vmatprep.subr.mxu0 0.0
    %114 = vmatpush1.msra.mxu0 0.0
    %115 = vmatprep.subr.mxu0 0.0
    %116 = vmatpush1.msra.mxu0 0.0
    %117 = vmatprep.subr.mxu0 0.0
    %118 = vmatpush1.msra.mxu0 0.0
    %119 = vmatprep.subr.mxu0 0.0
    %120 = vmatpush1.msra.mxu0 0.0
    %121 = vmatprep.subr.mxu0 0.0
    %122 = vmatpush1.msra.mxu0 0.0
    %123 = vmatprep.subr.mxu0 0.0
    %124 = vmatpush1.msra.mxu0 0.0
    %125 = vmatprep.subr.mxu0 0.0
    %126 = vmatpush1.msra.mxu0 0.0
    %127 = vmatprep.subr.mxu0 0.0
    %128 = vmatpush1.msra.mxu0 0.0
    %129 = vmatprep.subr.mxu0 0.0
    %130 = vmatpush1.msra.mxu0 0.0
    %131 = vmatprep.subr.mxu0 0.0
    %132 = vmatpush1.msra.mxu0 0.0
    %133 = vmatprep.subr.mxu0 0.0
    %134 = vmatpush1.msra.mxu0 0.0
    %135 = vmatprep.subr.mxu0 0.0
    %136 = vmatpush1.msra.mxu0 0.0
    %137 = vmatprep.subr.mxu0 0.0
    %138 = vmatpush1.msra.mxu0 0.0
    %139 = vmatprep.subr.mxu0 0.0
    %140 = vmatpush1.msra.mxu0 0.0
    %141 = vmatprep.subr.mxu0 0.0
    %142 = vmatpush1.msra.mxu0 0.0
    %143 = vmatprep.subr.mxu0 0.0
    %144 = vmatpush1.msra.mxu0 0.0
    %145 = vmatprep.subr.mxu0 0.0
    %146 = vmatpush1.msra.mxu0 0.0
    %147 = vmatprep.subr.mxu0 0.0
    %148 = vmatpush1.msra.mxu0 0.0
    %149 = vmatprep.subr.mxu0 0.0
    %150 = vmatpush1.msra.mxu0 0.0
    %151 = vmatprep.subr.mxu0 0.0
    %152 = vmatpush1.msra.mxu0 0.0
    %153 = vmatprep.subr.mxu0 0.0
    %154 = vmatpush1.msra.mxu0 0.0
    %155 = vmatprep.subr.mxu0 0.0
    %156 = vmatpush1.msra.mxu0 0.0
    %157 = vmatprep.subr.mxu0 0.0
    %158 = vmatpush1.msra.mxu0 0.0
    %159 = vmatprep.mubr.f32.mxu0 0.0
    %160 = vmatmul.mubr.f32.gmra.mrb[0].mxu0 %v93
    %v161 = vpop.f32.mrb[0].mxu0
    %v162 = vadd.f32 %v89, %v161
    %v163 = vpop.f32.mrb[0].mxu0
    %164 = vdwg.mxu0
    %v165 = vmax.f32 %v162, 0.0
    %v166 = vld [vmem:[#allocation7] sm:$0xff]
    %v167 = vld [vmem:[#allocation7 + $0x8] sm:$0xff]
    %v168 = vld [vmem:[#allocation7 + $0x10] sm:$0xff]
    %v169 = vld [vmem:[#allocation7 + $0x18] sm:$0xff]
    %v170 = vld [vmem:[#allocation7 + $0x20] sm:$0xff]
    %v171 = vld [vmem:[#allocation7 + $0x28] sm:$0xff]
    %v172 = vld [vmem:[#allocation7 + $0x30] sm:$0xff]
    %v173 = vld [vmem:[#allocation7 + $0x38] sm:$0xff]
    %v174 = vld [vmem:[#allocation7 + $0x40] sm:$0xff]
    %v175 = vld [vmem:[#allocation7 + $0x48] sm:$0xff]
    %v176 = vld [vmem:[#allocation7 + $0x50] sm:$0xff]
    %v177 = vld [vmem:[#allocation7 + $0x58] sm:$0xff]
    %v178 = vld [vmem:[#allocation7 + $0x60] sm:$0xff]
    %v179 = vld [vmem:[#allocation7 + $0x68] sm:$0xff]
    %v180 = vld [vmem:[#allocation7 + $0x70] sm:$0xff]
    %v181 = vld [vmem:[#allocation7 + $0x78] sm:$0xff]
    %v182 = vld [vmem:[%s5] sm:$0xf]
    %v184 = vlaneseq
    %v185 = vshrl.u32 %v184, 7
    %v186 = vsub.s32 0, %v185
    %v187 = vrot.slane %v182, %v186
    %v188 = vlaneseq
    %v189 = vshrl.u32 %v188, 7
    %v190 = vsub.s32 1, %v189
    %v191 = vrot.slane %v182, %v190
    %v192 = vlaneseq
    %v193 = vshrl.u32 %v192, 7
    %v194 = vsub.s32 2, %v193
    %v195 = vrot.slane %v182, %v194
    %v196 = vlaneseq
    %v197 = vshrl.u32 %v196, 7
    %v198 = vsub.s32 3, %v197
    %v199 = vrot.slane %v182, %v198
    %vm204 = vcmask 261120
    %v206 = vsel %vm204, %v165, 0
    %208 = vmatprep.subr.mxu0 %v167
    %209 = vmatpush1.msra.mxu0 %v166
    %210 = vmatprep.subr.mxu0 %v171
    %211 = vmatpush1.msra.mxu0 %v170
    %212 = vmatprep.subr.mxu0 %v175
    %213 = vmatpush1.msra.mxu0 %v174
    %214 = vmatprep.subr.mxu0 %v179
    %215 = vmatpush1.msra.mxu0 %v178
    %216 = vmatprep.subr.mxu0 0.0
    %217 = vmatpush1.msra.mxu0 0.0
    %218 = vmatprep.subr.mxu0 0.0
    %219 = vmatpush1.msra.mxu0 0.0
    %220 = vmatprep.subr.mxu0 0.0
    %221 = vmatpush1.msra.mxu0 0.0
    %222 = vmatprep.subr.mxu0 0.0
    %223 = vmatpush1.msra.mxu0 0.0
    %224 = vmatprep.subr.mxu0 0.0
    %225 = vmatpush1.msra.mxu0 0.0
    %226 = vmatprep.subr.mxu0 0.0
    %227 = vmatpush1.msra.mxu0 0.0
    %228 = vmatprep.subr.mxu0 0.0
    %229 = vmatpush1.msra.mxu0 0.0
    %230 = vmatprep.subr.mxu0 0.0
    %231 = vmatpush1.msra.mxu0 0.0
    %232 = vmatprep.subr.mxu0 0.0
    %233 = vmatpush1.msra.mxu0 0.0
    %234 = vmatprep.subr.mxu0 0.0
    %235 = vmatpush1.msra.mxu0 0.0
    %236 = vmatprep.subr.mxu0 0.0
    %237 = vmatpush1.msra.mxu0 0.0
    %238 = vmatprep.subr.mxu0 0.0
    %239 = vmatpush1.msra.mxu0 0.0
    %240 = vmatprep.subr.mxu0 0.0
    %241 = vmatpush1.msra.mxu0 0.0
    %242 = vmatprep.subr.mxu0 0.0
    %243 = vmatpush1.msra.mxu0 0.0
    %244 = vmatprep.subr.mxu0 0.0
    %245 = vmatpush1.msra.mxu0 0.0
    %246 = vmatprep.subr.mxu0 0.0
    %247 = vmatpush1.msra.mxu0 0.0
    %248 = vmatprep.subr.mxu0 0.0
    %249 = vmatpush1.msra.mxu0 0.0
    %250 = vmatprep.subr.mxu0 0.0
    %251 = vmatpush1.msra.mxu0 0.0
    %252 = vmatprep.subr.mxu0 0.0
    %253 = vmatpush1.msra.mxu0 0.0
    %254 = vmatprep.subr.mxu0 0.0
    %255 = vmatpush1.msra.mxu0 0.0
    %256 = vmatprep.subr.mxu0 0.0
    %257 = vmatpush1.msra.mxu0 0.0
    %258 = vmatprep.subr.mxu0 0.0
    %259 = vmatpush1.msra.mxu0 0.0
    %260 = vmatprep.subr.mxu0 0.0
    %261 = vmatpush1.msra.mxu0 0.0
    %262 = vmatprep.subr.mxu0 0.0
    %263 = vmatpush1.msra.mxu0 0.0
    %264 = vmatprep.subr.mxu0 0.0
    %265 = vmatpush1.msra.mxu0 0.0
    %266 = vmatprep.subr.mxu0 0.0
    %267 = vmatpush1.msra.mxu0 0.0
    %268 = vmatprep.subr.mxu0 0.0
    %269 = vmatpush1.msra.mxu0 0.0
    %270 = vmatprep.subr.mxu0 0.0
    %271 = vmatpush1.msra.mxu0 0.0
    %272 = vmatprep.mubr.f32.mxu0 0.0
    %273 = vmatmul.mubr.f32.gmra.mrb[0].mxu0 %v206
    %v274 = vpop.f32.mrb[0].mxu0
    %v275 = vadd.f32 %v187, %v274
    %v276 = vpop.f32.mrb[0].mxu0
    %v277 = vadd.f32 %v191, %v276
    %278 = vdwg.mxu0
    %279 = vmatprep.subr.mxu0 %v169
    %280 = vmatpush1.msra.mxu0 %v168
    %281 = vmatprep.subr.mxu0 %v173
    %282 = vmatpush1.msra.mxu0 %v172
    %283 = vmatprep.subr.mxu0 %v177
    %284 = vmatpush1.msra.mxu0 %v176
    %285 = vmatprep.subr.mxu0 %v181
    %286 = vmatpush1.msra.mxu0 %v180
    %287 = vmatprep.subr.mxu0 0.0
    %288 = vmatpush1.msra.mxu0 0.0
    %289 = vmatprep.subr.mxu0 0.0
    %290 = vmatpush1.msra.mxu0 0.0
    %291 = vmatprep.subr.mxu0 0.0
    %292 = vmatpush1.msra.mxu0 0.0
    %293 = vmatprep.subr.mxu0 0.0
    %294 = vmatpush1.msra.mxu0 0.0
    %295 = vmatprep.subr.mxu0 0.0
    %296 = vmatpush1.msra.mxu0 0.0
    %297 = vmatprep.subr.mxu0 0.0
    %298 = vmatpush1.msra.mxu0 0.0
    %299 = vmatprep.subr.mxu0 0.0
    %300 = vmatpush1.msra.mxu0 0.0
    %301 = vmatprep.subr.mxu0 0.0
    %302 = vmatpush1.msra.mxu0 0.0
    %303 = vmatprep.subr.mxu0 0.0
    %304 = vmatpush1.msra.mxu0 0.0
    %305 = vmatprep.subr.mxu0 0.0
    %306 = vmatpush1.msra.mxu0 0.0
    %307 = vmatprep.subr.mxu0 0.0
    %308 = vmatpush1.msra.mxu0 0.0
    %309 = vmatprep.subr.mxu0 0.0
    %310 = vmatpush1.msra.mxu0 0.0
    %311 = vmatprep.subr.mxu0 0.0
    %312 = vmatpush1.msra.mxu0 0.0
    %313 = vmatprep.subr.mxu0 0.0
    %314 = vmatpush1.msra.mxu0 0.0
    %315 = vmatprep.subr.mxu0 0.0
    %316 = vmatpush1.msra.mxu0 0.0
    %317 = vmatprep.subr.mxu0 0.0
    %318 = vmatpush1.msra.mxu0 0.0
    %319 = vmatprep.subr.mxu0 0.0
    %320 = vmatpush1.msra.mxu0 0.0
    %321 = vmatprep.subr.mxu0 0.0
    %322 = vmatpush1.msra.mxu0 0.0
    %323 = vmatprep.subr.mxu0 0.0
    %324 = vmatpush1.msra.mxu0 0.0
    %325 = vmatprep.subr.mxu0 0.0
    %326 = vmatpush1.msra.mxu0 0.0
    %327 = vmatprep.subr.mxu0 0.0
    %328 = vmatpush1.msra.mxu0 0.0
    %329 = vmatprep.subr.mxu0 0.0
    %330 = vmatpush1.msra.mxu0 0.0
    %331 = vmatprep.subr.mxu0 0.0
    %332 = vmatpush1.msra.mxu0 0.0
    %333 = vmatprep.subr.mxu0 0.0
    %334 = vmatpush1.msra.mxu0 0.0
    %335 = vmatprep.subr.mxu0 0.0
    %336 = vmatpush1.msra.mxu0 0.0
    %337 = vmatprep.subr.mxu0 0.0
    %338 = vmatpush1.msra.mxu0 0.0
    %339 = vmatprep.subr.mxu0 0.0
    %340 = vmatpush1.msra.mxu0 0.0
    %341 = vmatprep.subr.mxu0 0.0
    %342 = vmatpush1.msra.mxu0 0.0
    %343 = vmatprep.mubr.f32.mxu0 0.0
    %344 = vmatmul.mubr.f32.gmra.mrb[0].mxu0 %v206
    %v345 = vpop.f32.mrb[0].mxu0
    %v346 = vadd.f32 %v195, %v345
    %v347 = vpop.f32.mrb[0].mxu0
    %v348 = vadd.f32 %v199, %v347
    %349 = vdwg.mxu0
    %v350 = vld [vmem:[#allocation8] sm:$0xff]
    %v351 = vld [vmem:[#allocation8 + $0x8] sm:$0xff]
    %v352 = vld [vmem:[#allocation8 + $0x10] sm:$0xff]
    %v353 = vld [vmem:[#allocation8 + $0x18] sm:$0xff]
    %v354 = vld [vmem:[#allocation8 + $0x20] sm:$0xff]
    %v355 = vld [vmem:[#allocation8 + $0x28] sm:$0xff]
    %v356 = vld [vmem:[#allocation8 + $0x30] sm:$0xff]
    %v357 = vld [vmem:[#allocation8 + $0x38] sm:$0xff]
    %v358 = vld [vmem:[#allocation8 + $0x40] sm:$0xff]
    %v359 = vld [vmem:[#allocation8 + $0x48] sm:$0xff]
    %v360 = vld [vmem:[#allocation8 + $0x50] sm:$0xff]
    %v361 = vld [vmem:[#allocation8 + $0x58] sm:$0xff]
    %v362 = vld [vmem:[#allocation8 + $0x60] sm:$0xff]
    %v363 = vld [vmem:[#allocation8 + $0x68] sm:$0xff]
    %v364 = vld [vmem:[#allocation8 + $0x70] sm:$0xff]
    %v365 = vld [vmem:[#allocation8 + $0x78] sm:$0xff]
    %v366 = vld [vmem:[%s7] sm:$0xf]
    %v368 = vlaneseq
    %v369 = vshrl.u32 %v368, 7
    %v370 = vsub.s32 0, %v369
    %v371 = vrot.slane %v366, %v370
    %v372 = vlaneseq
    %v373 = vshrl.u32 %v372, 7
    %v374 = vsub.s32 1, %v373
    %v375 = vrot.slane %v366, %v374
    %v376 = vlaneseq
    %v377 = vshrl.u32 %v376, 7
    %v378 = vsub.s32 2, %v377
    %v379 = vrot.slane %v366, %v378
    %v380 = vlaneseq
    %v381 = vshrl.u32 %v380, 7
    %v382 = vsub.s32 3, %v381
    %v383 = vrot.slane %v366, %v382
    %388 = vrot.lane.b32.xlu0 %v165, 96
    %v389 = vpop.permute.xlu0 %388
    %v390 = vsel %vm204, %v389, 0
    %392 = vmatprep.subr.mxu0 %v351
    %393 = vmatpush1.msra.mxu0 %v350
    %394 = vmatprep.subr.mxu0 %v355
    %395 = vmatpush1.msra.mxu0 %v354
    %396 = vmatprep.subr.mxu0 %v359
    %397 = vmatpush1.msra.mxu0 %v358
    %398 = vmatprep.subr.mxu0 %v363
    %399 = vmatpush1.msra.mxu0 %v362
    %400 = vmatprep.subr.mxu0 0.0
    %401 = vmatpush1.msra.mxu0 0.0
    %402 = vmatprep.subr.mxu0 0.0
    %403 = vmatpush1.msra.mxu0 0.0
    %404 = vmatprep.subr.mxu0 0.0
    %405 = vmatpush1.msra.mxu0 0.0
    %406 = vmatprep.subr.mxu0 0.0
    %407 = vmatpush1.msra.mxu0 0.0
    %408 = vmatprep.subr.mxu0 0.0
    %409 = vmatpush1.msra.mxu0 0.0
    %410 = vmatprep.subr.mxu0 0.0
    %411 = vmatpush1.msra.mxu0 0.0
    %412 = vmatprep.subr.mxu0 0.0
    %413 = vmatpush1.msra.mxu0 0.0
    %414 = vmatprep.subr.mxu0 0.0
    %415 = vmatpush1.msra.mxu0 0.0
    %416 = vmatprep.subr.mxu0 0.0
    %417 = vmatpush1.msra.mxu0 0.0
    %418 = vmatprep.subr.mxu0 0.0
    %419 = vmatpush1.msra.mxu0 0.0
    %420 = vmatprep.subr.mxu0 0.0
    %421 = vmatpush1.msra.mxu0 0.0
    %422 = vmatprep.subr.mxu0 0.0
    %423 = vmatpush1.msra.mxu0 0.0
    %424 = vmatprep.subr.mxu0 0.0
    %425 = vmatpush1.msra.mxu0 0.0
    %426 = vmatprep.subr.mxu0 0.0
    %427 = vmatpush1.msra.mxu0 0.0
    %428 = vmatprep.subr.mxu0 0.0
    %429 = vmatpush1.msra.mxu0 0.0
    %430 = vmatprep.subr.mxu0 0.0
    %431 = vmatpush1.msra.mxu0 0.0
    %432 = vmatprep.subr.mxu0 0.0
    %433 = vmatpush1.msra.mxu0 0.0
    %434 = vmatprep.subr.mxu0 0.0
    %435 = vmatpush1.msra.mxu0 0.0
    %436 = vmatprep.subr.mxu0 0.0
    %437 = vmatpush1.msra.mxu0 0.0
    %438 = vmatprep.subr.mxu0 0.0
    %439 = vmatpush1.msra.mxu0 0.0
    %440 = vmatprep.subr.mxu0 0.0
    %441 = vmatpush1.msra.mxu0 0.0
    %442 = vmatprep.subr.mxu0 0.0
    %443 = vmatpush1.msra.mxu0 0.0
    %444 = vmatprep.subr.mxu0 0.0
    %445 = vmatpush1.msra.mxu0 0.0
    %446 = vmatprep.subr.mxu0 0.0
    %447 = vmatpush1.msra.mxu0 0.0
    %448 = vmatprep.subr.mxu0 0.0
    %449 = vmatpush1.msra.mxu0 0.0
    %450 = vmatprep.subr.mxu0 0.0
    %451 = vmatpush1.msra.mxu0 0.0
    %452 = vmatprep.subr.mxu0 0.0
    %453 = vmatpush1.msra.mxu0 0.0
    %454 = vmatprep.subr.mxu0 0.0
    %455 = vmatpush1.msra.mxu0 0.0
    %456 = vmatprep.mubr.f32.mxu0 0.0
    %457 = vmatmul.mubr.f32.gmra.mrb[0].mxu0 %v390
    %v458 = vpop.f32.mrb[0].mxu0
    %v459 = vadd.f32 %v371, %v458
    %v460 = vpop.f32.mrb[0].mxu0
    %v461 = vadd.f32 %v375, %v460
    %462 = vdwg.mxu0
    %463 = vmatprep.subr.mxu0 %v353
    %464 = vmatpush1.msra.mxu0 %v352
    %465 = vmatprep.subr.mxu0 %v357
    %466 = vmatpush1.msra.mxu0 %v356
    %467 = vmatprep.subr.mxu0 %v361
    %468 = vmatpush1.msra.mxu0 %v360
    %469 = vmatprep.subr.mxu0 %v365
    %470 = vmatpush1.msra.mxu0 %v364
    %471 = vmatprep.subr.mxu0 0.0
    %472 = vmatpush1.msra.mxu0 0.0
    %473 = vmatprep.subr.mxu0 0.0
    %474 = vmatpush1.msra.mxu0 0.0
    %475 = vmatprep.subr.mxu0 0.0
    %476 = vmatpush1.msra.mxu0 0.0
    %477 = vmatprep.subr.mxu0 0.0
    %478 = vmatpush1.msra.mxu0 0.0
    %479 = vmatprep.subr.mxu0 0.0
    %480 = vmatpush1.msra.mxu0 0.0
    %481 = vmatprep.subr.mxu0 0.0
    %482 = vmatpush1.msra.mxu0 0.0
    %483 = vmatprep.subr.mxu0 0.0
    %484 = vmatpush1.msra.mxu0 0.0
    %485 = vmatprep.subr.mxu0 0.0
    %486 = vmatpush1.msra.mxu0 0.0
    %487 = vmatprep.subr.mxu0 0.0
    %488 = vmatpush1.msra.mxu0 0.0
    %489 = vmatprep.subr.mxu0 0.0
    %490 = vmatpush1.msra.mxu0 0.0
    %491 = vmatprep.subr.mxu0 0.0
    %492 = vmatpush1.msra.mxu0 0.0
    %493 = vmatprep.subr.mxu0 0.0
    %494 = vmatpush1.msra.mxu0 0.0
    %495 = vmatprep.subr.mxu0 0.0
    %496 = vmatpush1.msra.mxu0 0.0
    %497 = vmatprep.subr.mxu0 0.0
    %498 = vmatpush1.msra.mxu0 0.0
    %499 = vmatprep.subr.mxu0 0.0
    %500 = vmatpush1.msra.mxu0 0.0
    %501 = vmatprep.subr.mxu0 0.0
    %502 = vmatpush1.msra.mxu0 0.0
    %503 = vmatprep.subr.mxu0 0.0
    %504 = vmatpush1.msra.mxu0 0.0
    %505 = vmatprep.subr.mxu0 0.0
    %506 = vmatpush1.msra.mxu0 0.0
    %507 = vmatprep.subr.mxu0 0.0
    %508 = vmatpush1.msra.mxu0 0.0
    %509 = vmatprep.subr.mxu0 0.0
    %510 = vmatpush1.msra.mxu0 0.0
    %511 = vmatprep.subr.mxu0 0.0
    %512 = vmatpush1.msra.mxu0 0.0
    %513 = vmatprep.subr.mxu0 0.0
    %514 = vmatpush1.msra.mxu0 0.0
    %515 = vmatprep.subr.mxu0 0.0
    %516 = vmatpush1.msra.mxu0 0.0
    %517 = vmatprep.subr.mxu0 0.0
    %518 = vmatpush1.msra.mxu0 0.0
    %519 = vmatprep.subr.mxu0 0.0
    %520 = vmatpush1.msra.mxu0 0.0
    %521 = vmatprep.subr.mxu0 0.0
    %522 = vmatpush1.msra.mxu0 0.0
    %523 = vmatprep.subr.mxu0 0.0
    %524 = vmatpush1.msra.mxu0 0.0
    %525 = vmatprep.subr.mxu0 0.0
    %526 = vmatpush1.msra.mxu0 0.0
    %527 = vmatprep.mubr.f32.mxu0 0.0
    %528 = vmatmul.mubr.f32.gmra.mrb[0].mxu0 %v390
    %v529 = vpop.f32.mrb[0].mxu0
    %v530 = vadd.f32 %v379, %v529
    %v531 = vpop.f32.mrb[0].mxu0
    %v532 = vadd.f32 %v383, %v531
    %533 = vdwg.mxu0
    %v534 = vmax.f32 %v459, -3.0
    %v535 = vmax.f32 %v461, -3.0
    %v536 = vmax.f32 %v530, -3.0
    %v537 = vmax.f32 %v532, -3.0
    %v538 = vmin.f32 %v534, 5.0
    %v539 = vmin.f32 %v535, 5.0
    %v540 = vmin.f32 %v536, 5.0
    %v541 = vmin.f32 %v537, 5.0
    %v542 = vld [vmem:[#allocation2] sm:$0xff]
    %v547 = vcombine.low %v275, %v277
    %v548 = vcombine.low %v346, %v348
    %v550 = vunpack.c.l.s4 1983009808
    %v551 = vunpack.c.0.s8 %v550
    %v552 = vlaneseq
    %v553 = vshrl.u32 %v552, 7
    %v554 = vsub.s32 %v551, %v553
    %v555 = vrot.slane %v547, %v554
    %v557 = vunpack.c.l.s4 1983009808
    %v558 = vunpack.c.0.s8 %v557
    %v559 = vlaneseq
    %v560 = vshrl.u32 %v559, 7
    %v561 = vsub.s32 %v558, %v560
    %v562 = vrot.slane %v548, %v561
    %v563 = vcombine.low %v555, %v562
    %v565 = vsub.f32 %v542, %v563
    %v566 = vmul.f32 %v538, -0.5
    %v567 = vmul.f32 %v539, -0.5
    %v568 = vmul.f32 %v540, -0.5
    %v569 = vmul.f32 %v541, -0.5
    %v570 = vmul.f32 %v566, 1.442695
    %v571 = vpow.pop %v570
    %v572 = vmul.f32 %v567, 1.442695
    %v573 = vpow.pop %v572
    %v574 = vmul.f32 %v568, 1.442695
    %v575 = vpow.pop %v574
    %v576 = vmul.f32 %v569, 1.442695
    %v577 = vpow.pop %v576
    %v582 = vcombine.low %v571, %v573
    %v583 = vcombine.low %v575, %v577
    %v585 = vunpack.c.l.s4 1983009808
    %v586 = vunpack.c.0.s8 %v585
    %v587 = vlaneseq
    %v588 = vshrl.u32 %v587, 7
    %v589 = vsub.s32 %v586, %v588
    %v590 = vrot.slane %v582, %v589
    %v592 = vunpack.c.l.s4 1983009808
    %v593 = vunpack.c.0.s8 %v592
    %v594 = vlaneseq
    %v595 = vshrl.u32 %v594, 7
    %v596 = vsub.s32 %v593, %v595
    %v597 = vrot.slane %v583, %v596
    %v598 = vcombine.low %v590, %v597
    %v600 = vmul.f32 %v565, %v598
    %v601 = vmul.f32 %v600, %v600
    %v606 = vcombine.low %v538, %v539
    %v607 = vcombine.low %v540, %v541
    %v609 = vunpack.c.l.s4 1983009808
    %v610 = vunpack.c.0.s8 %v609
    %v611 = vlaneseq
    %v612 = vshrl.u32 %v611, 7
    %v613 = vsub.s32 %v610, %v612
    %v614 = vrot.slane %v606, %v613
    %v616 = vunpack.c.l.s4 1983009808
    %v617 = vunpack.c.0.s8 %v616
    %v618 = vlaneseq
    %v619 = vshrl.u32 %v618, 7
    %v620 = vsub.s32 %v617, %v619
    %v621 = vrot.slane %v607, %v620
    %v622 = vcombine.low %v614, %v621
    %v624 = vadd.f32 %v601, %v622
    %v626 = vcombine.high %v624, %v624
    %v628 = vunpack.c.l.s4 1983009808
    %v629 = vunpack.c.0.s8 %v628
    %v630 = vlaneseq
    %v631 = vshrl.u32 %v630, 7
    %v632 = vsub.s32 %v629, %v631
    %v633 = vrot.slane %v624, %v632
    %v635 = vunpack.c.l.s4 1983009808
    %v636 = vunpack.c.0.s8 %v635
    %v637 = vlaneseq
    %v638 = vshrl.u32 %v637, 7
    %v639 = vsub.s32 %v636, %v638
    %v640 = vrot.slane %v626, %v639
    %v641 = vcombine.high %v633, %v633
    %v642 = vcombine.high %v640, %v640
    %vm647 = vcmask 1041408
    %v648 = vsel %vm647, %v633, 0.0
    %v649 = vsel %vm647, %v641, 0.0
    %v650 = vadd.f32 %v648, %v649
    %v651 = vsel %vm647, %v640, 0.0
    %v652 = vadd.f32 %v650, %v651
    %v653 = vsel %vm647, %v642, 0.0
    %v654 = vadd.f32 %v652, %v653
    %655 = vadd.xlane.f32.xlu0 %v654
    %v656 = vpop.xlane.xlu0 %655
    %v657 = vmul.f32 %v656, -0.5
    %v658 = vsub.f32 %v657, 470.49652
    %v660 = vlaneseq
    %v661 = vand.u32 %v660, 127
    %v662 = vlaneseq
    %v663 = vshrl.u32 %v662, 7
    %v664 = vsub.s32 %v661, %v663
    %v665 = vrot.slane %v658, %v664
    %vm667 = vcmask 8192
    %668 = vst.msk [vmem:[#allocation10] sm:$0x1] %vm667, %v665
    // Predicated region
    $region50: #{tpu_custom_call.1} parent=1 // pred_check
      _
    $region51: #{tpu_custom_call.1} parent=1 // pred_check_branch
      %670 = sbr.rel (0) target = $region53
    $region52: #{tpu_custom_call.1} parent=1 // pred_region
      %s672 = ssub.s32 16, 16
      %673 = vsyncadd [#allocation4], %s672
      %s675 = sshll.u32 [#allocation10], 4
      %s676 = int_to_ptr.vmem [resolvable:$true] %s675
      %678 = dma.vmem_to_hbm [thread:$0]  %s676, 16, %s8, [#allocation4]
    $region53: #{tpu_custom_call.1} parent=1 // pred_fallthru
      _
    // Predicated region
    $region54: #{tpu_custom_call.1} parent=1 // pred_check
      _
    $region55: #{tpu_custom_call.1} parent=1 // pred_check_branch
      %680 = sbr.rel (0) target = $region57
    $region56: #{tpu_custom_call.1} parent=1 // pred_region
      %681 = dma.done [#allocation4], 16
    $region57: #{tpu_custom_call.1} parent=1 // pred_fallthru
      _
    %682 = vsyncpa [#allocation3], 1
    %683 = vsyncpa [#allocation6], 1
    %684 = vsyncpa [#allocation9], 1
    %685 = vsyncpa [#allocation4], 1

</llo_original>
